<compile_context>
chip_gen: v7x
topology: tpu7x:2x2x1
jax: 0.10.0
libtpu: 0.0.40
codegen_flags: <defaults>
</compile_context>

<pallas_src>
import functools
import math

import jax
import jax.numpy as jnp
from jax import lax
from jax.experimental import pallas as pl
from jax.experimental.pallas import tpu as pltpu


# ----------------------------------------------------------------------------
# Pallas kernel: one grid step = (batch n, output row oh, kernel row kh)
# ----------------------------------------------------------------------------

def _conv_row_kernel(x_ref, w_ref, b_ref, o_ref, acc_ref, *, KW, OW, stride):
    """Direct conv, one output row per (n, oh), reduced over kh in the grid.

    x_ref   : (1, 1, S, C, Wpp) bf16  -- one padded input row, phase-split by stride
    w_ref   : (KH, OC, KW*C)    bf16  -- full weight, resident in VMEM
    b_ref   : (OC, 1)           f32   -- bias, resident in VMEM
    o_ref   : (1, 1, OC, OW)    f32   -- one output row, lane-dense in OW
    acc_ref : (OC, OW)          f32   -- f32 accumulator across kh (innermost axis)
    """
    kh = pl.program_id(2)

    @pl.when(kh == 0)
    def _init():
        acc_ref[...] = jnp.zeros_like(acc_ref)

    # Gather the KW shifted windows of this row (VMEM-local, no HBM im2col).
    taps = []
    for kw in range(KW):
        phase, off = kw % stride, kw // stride
        taps.append(x_ref[0, 0, phase, :, pl.ds(off, OW)])        # (C, OW) bf16
    patch = jnp.concatenate(taps, axis=0)                          # (KW*C, OW) bf16

    wk = w_ref[kh]                                                 # (OC, KW*C) bf16
    acc_ref[...] += jnp.dot(wk, patch, preferred_element_type=jnp.float32)

    @pl.when(kh == pl.num_programs(2) - 1)
    def _finalize():
        # Fused bias epilogue, single store of the finished row.
        o_ref[0, 0] = (acc_ref[...] + b_ref[...]).astype(o_ref.dtype)


# ----------------------------------------------------------------------------
# ConvLayer forward: reflection pad (k//2) + Conv2d(stride)
# ----------------------------------------------------------------------------

@functools.partial(jax.jit, static_argnames=("stride",))
def conv_layer_forward(params, x, stride=1):
    w = params["w"]                      # (OC, C, KH, KW) f32, PyTorch OIHW
    b = params["b"]                      # (OC,) f32
    OC, C, KH, KW = w.shape
    N, Cx, H, W = x.shape
    assert Cx == C
    s = int(stride)

    pad = KH // 2                        # ConvLayer: reflection pad = kernel//2
    xr = jnp.pad(x, ((0, 0), (0, 0), (pad, pad), (pad, pad)), mode="reflect")
    Hp, Wp = H + 2 * pad, W + 2 * pad
    OH = (Hp - KH) // s + 1
    OW = (Wp - KW) // s + 1

    # Stride-phase decomposition of the width axis: column j = q*s + p, so the
    # kernel only needs contiguous windows per phase.  Cast activations to bf16.
    Wpp = -(-Wp // s)
    xr = jnp.pad(xr, ((0, 0), (0, 0), (0, 0), (0, Wpp * s - Wp)))
    x5 = xr.reshape(N, C, Hp, Wpp, s)                             # [..., q, p]
    xk = jnp.transpose(x5, (0, 2, 4, 1, 3)).astype(jnp.bfloat16)  # (N, Hp, s, C, Wpp)

    # Weight -> (KH, OC, KW*C) with columns ordered (kw, c) to match the patch.
    wk = jnp.transpose(w, (2, 0, 3, 1)).reshape(KH, OC, KW * C).astype(jnp.bfloat16)
    bk = b.reshape(OC, 1).astype(jnp.float32)

    kernel = functools.partial(_conv_row_kernel, KW=KW, OW=OW, stride=s)

    out = pl.pallas_call(
        kernel,
        out_shape=jax.ShapeDtypeStruct((N, OH, OC, OW), jnp.float32),
        grid_spec=pltpu.PrefetchScalarGridSpec(
            num_scalar_prefetch=0,
            grid=(N, OH, KH),
            in_specs=[
                # One padded input row per step (block index == row index).
                pl.BlockSpec((1, 1, s, C, Wpp),
                             lambda n, oh, kh: (n, oh * s + kh, 0, 0, 0)),
                # Whole weight, constant index -> resident in VMEM.
                pl.BlockSpec((KH, OC, KW * C), lambda n, oh, kh: (0, 0, 0)),
                # Bias, resident.
                pl.BlockSpec((OC, 1), lambda n, oh, kh: (0, 0)),
            ],
            out_specs=pl.BlockSpec((1, 1, OC, OW),
                                   lambda n, oh, kh: (n, oh, 0, 0)),
            scratch_shapes=[pltpu.VMEM((OC, OW), jnp.float32)],
        ),
        compiler_params=pltpu.CompilerParams(
            dimension_semantics=("parallel", "parallel", "arbitrary")),
    )(xk, wk, bk)

    return jnp.transpose(out, (0, 2, 1, 3))                       # (N, OC, OH, OW)


# ----------------------------------------------------------------------------
# Pure-JAX reference (same bf16 rounding of inputs, f32 accumulation)
# ----------------------------------------------------------------------------

def conv_layer_reference(params, x, stride=1):
    w = params["w"].astype(jnp.bfloat16).astype(jnp.float32)
    b = params["b"]
    k = w.shape[2]
    pad = k // 2
    xr = jnp.pad(x, ((0, 0), (0, 0), (pad, pad), (pad, pad)), mode="reflect")
    xr = xr.astype(jnp.bfloat16).astype(jnp.float32)
    out = lax.conv_general_dilated(
        xr, w, window_strides=(stride, stride), padding="VALID",
        dimension_numbers=("NCHW", "OIHW", "NCHW"),
        precision=lax.Precision.HIGHEST)
    return out + b[None, :, None, None]


def init_conv_layer(key, in_ch, out_ch, kernel_size):
    k1, k2 = jax.random.split(key)
    fan_in = in_ch * kernel_size * kernel_size
    bound = 1.0 / math.sqrt(fan_in)
    w = jax.random.uniform(k1, (out_ch, in_ch, kernel_size, kernel_size),
                           jnp.float32, -bound, bound)
    b = jax.random.uniform(k2, (out_ch,), jnp.float32, -bound, bound)
    return {"w": w, "b": b}


# ----------------------------------------------------------------------------

if __name__ == "__main__":
    key = jax.random.PRNGKey(0)
    k_p1, k_p2, k_p3, k_x1, k_x2 = jax.random.split(key, 5)

    # ConvLayer(3, 16, kernel_size=11, stride=1)  -- V-MSBDN conv_input
    p1 = init_conv_layer(k_p1, 3, 16, 11)
    x1 = jax.random.normal(k_x1, (2, 3, 16, 16), jnp.float32)
    y1 = jax.block_until_ready(conv_layer_forward(p1, x1, stride=1))
    r1 = conv_layer_reference(p1, x1, stride=1)
    assert y1.shape == (2, 16, 16, 16), y1.shape
    assert bool(jnp.allclose(y1, r1, atol=2e-3, rtol=2e-3)), \
        float(jnp.max(jnp.abs(y1 - r1)))

    # ConvLayer(16, 3, kernel_size=3, stride=1)  -- V-MSBDN conv_output
    p2 = init_conv_layer(k_p2, 16, 3, 3)
    x2 = jax.random.normal(k_x2, (2, 16, 16, 16), jnp.float32)
    y2 = jax.block_until_ready(conv_layer_forward(p2, x2, stride=1))
    r2 = conv_layer_reference(p2, x2, stride=1)
    assert y2.shape == (2, 3, 16, 16), y2.shape
    assert bool(jnp.allclose(y2, r2, atol=2e-3, rtol=2e-3)), \
        float(jnp.max(jnp.abs(y2 - r2)))

    # ConvLayer(3, 8, kernel_size=5, stride=2)  -- exercises the stride path
    p3 = init_conv_layer(k_p3, 3, 8, 5)
    y3 = jax.block_until_ready(conv_layer_forward(p3, x1, stride=2))
    r3 = conv_layer_reference(p3, x1, stride=2)
    assert y3.shape == (2, 8, 8, 8), y3.shape
    assert bool(jnp.allclose(y3, r3, atol=2e-3, rtol=2e-3)), \
        float(jnp.max(jnp.abs(y3 - r3)))

    assert bool(jnp.all(jnp.isfinite(y1)))
    assert bool(jnp.all(jnp.isfinite(y2)))
    assert bool(jnp.all(jnp.isfinite(y3)))
    print("KERNEL_OK")
</pallas_src>

<mosaic_0001>
module attributes {stable_mosaic.version = 11 : i64} {
  func.func @_conv_row_kernel(%arg0: i32, %arg1: i32, %arg2: i32, %arg3: memref<1x1x1x3x26xbf16, #tpu.memory_space<vmem>>, %arg4: memref<11x16x33xbf16, #tpu.memory_space<vmem>>, %arg5: memref<16x1xf32, #tpu.memory_space<vmem>>, %arg6: memref<1x1x16x16xf32, #tpu.memory_space<vmem>>, %arg7: memref<16x16xf32, #tpu.memory_space<vmem>>) attributes {dimension_semantics = [#tpu.dimension_semantics<parallel>, #tpu.dimension_semantics<parallel>, #tpu.dimension_semantics<arbitrary>], iteration_bounds = array<i64: 2, 16, 11>, scalar_prefetch = 0 : i64, scratch_operands = 1 : i64, tpu.core_type = #tpu.core_type<tc>, window_params = [{transform_indices = @transform_0, window_bounds = array<i64: 1, 1, 1, 3, 26>}, {pipeline_mode = #tpu.pipeline_mode<synchronous>, transform_indices = @transform_1, window_bounds = array<i64: 11, 16, 33>}, {pipeline_mode = #tpu.pipeline_mode<synchronous>, transform_indices = @transform_2, window_bounds = array<i64: 16, 1>}, {transform_indices = @transform_3, window_bounds = array<i64: 1, 1, 16, 16>}]} {
    %c0_i32 = arith.constant 0 : i32
    %0 = arith.cmpi eq, %arg2, %c0_i32 : i32
    %1 = arith.extui %0 : i1 to i32
    %c0_i32_0 = arith.constant 0 : i32
    %2 = arith.cmpi ne, %1, %c0_i32_0 : i32
    scf.if %2 {
      %cst_52 = arith.constant 0.000000e+00 : f32
      %36 = vector.broadcast %cst_52 : f32 to vector<16x16xf32>
      %c0_53 = arith.constant 0 : index
      %c0_54 = arith.constant 0 : index
      %37 = vector.load %arg7[%c0_53, %c0_54] : memref<16x16xf32, #tpu.memory_space<vmem>>, vector<16x16xf32>
      tpu.vector_store %arg7[%c0_53, %c0_54], %36 {strides = array<i32>} : memref<16x16xf32, #tpu.memory_space<vmem>>, vector<16x16xf32>,
    } else {
    }
    %c0 = arith.constant 0 : index
    %c0_1 = arith.constant 0 : index
    %c0_2 = arith.constant 0 : index
    %c0_3 = arith.constant 0 : index
    %c0_4 = arith.constant 0 : index
    %3 = vector.load %arg3[%c0, %c0_1, %c0_2, %c0_3, %c0_4] : memref<1x1x1x3x26xbf16, #tpu.memory_space<vmem>>, vector<1x1x1x3x16xbf16>
    %4 = vector.shape_cast %3 : vector<1x1x1x3x16xbf16> to vector<3x16xbf16>
    %c0_5 = arith.constant 0 : index
    %c0_6 = arith.constant 0 : index
    %c0_7 = arith.constant 0 : index
    %c0_8 = arith.constant 0 : index
    %c1 = arith.constant 1 : index
    %5 = vector.load %arg3[%c0_5, %c0_6, %c0_7, %c0_8, %c1] : memref<1x1x1x3x26xbf16, #tpu.memory_space<vmem>>, vector<1x1x1x3x16xbf16>
    %6 = vector.shape_cast %5 : vector<1x1x1x3x16xbf16> to vector<3x16xbf16>
    %c0_9 = arith.constant 0 : index
    %c0_10 = arith.constant 0 : index
    %c0_11 = arith.constant 0 : index
    %c0_12 = arith.constant 0 : index
    %c2 = arith.constant 2 : index
    %7 = vector.load %arg3[%c0_9, %c0_10, %c0_11, %c0_12, %c2] : memref<1x1x1x3x26xbf16, #tpu.memory_space<vmem>>, vector<1x1x1x3x16xbf16>
    %8 = vector.shape_cast %7 : vector<1x1x1x3x16xbf16> to vector<3x16xbf16>
    %c0_13 = arith.constant 0 : index
    %c0_14 = arith.constant 0 : index
    %c0_15 = arith.constant 0 : index
    %c0_16 = arith.constant 0 : index
    %c3 = arith.constant 3 : index
    %9 = vector.load %arg3[%c0_13, %c0_14, %c0_15, %c0_16, %c3] : memref<1x1x1x3x26xbf16, #tpu.memory_space<vmem>>, vector<1x1x1x3x16xbf16>
    %10 = vector.shape_cast %9 : vector<1x1x1x3x16xbf16> to vector<3x16xbf16>
    %c0_17 = arith.constant 0 : index
    %c0_18 = arith.constant 0 : index
    %c0_19 = arith.constant 0 : index
    %c0_20 = arith.constant 0 : index
    %c4 = arith.constant 4 : index
    %11 = vector.load %arg3[%c0_17, %c0_18, %c0_19, %c0_20, %c4] : memref<1x1x1x3x26xbf16, #tpu.memory_space<vmem>>, vector<1x1x1x3x16xbf16>
    %12 = vector.shape_cast %11 : vector<1x1x1x3x16xbf16> to vector<3x16xbf16>
    %c0_21 = arith.constant 0 : index
    %c0_22 = arith.constant 0 : index
    %c0_23 = arith.constant 0 : index
    %c0_24 = arith.constant 0 : index
    %c5 = arith.constant 5 : index
    %13 = vector.load %arg3[%c0_21, %c0_22, %c0_23, %c0_24, %c5] : memref<1x1x1x3x26xbf16, #tpu.memory_space<vmem>>, vector<1x1x1x3x16xbf16>
    %14 = vector.shape_cast %13 : vector<1x1x1x3x16xbf16> to vector<3x16xbf16>
    %c0_25 = arith.constant 0 : index
    %c0_26 = arith.constant 0 : index
    %c0_27 = arith.constant 0 : index
    %c0_28 = arith.constant 0 : index
    %c6 = arith.constant 6 : index
    %15 = vector.load %arg3[%c0_25, %c0_26, %c0_27, %c0_28, %c6] : memref<1x1x1x3x26xbf16, #tpu.memory_space<vmem>>, vector<1x1x1x3x16xbf16>
    %16 = vector.shape_cast %15 : vector<1x1x1x3x16xbf16> to vector<3x16xbf16>
    %c0_29 = arith.constant 0 : index
    %c0_30 = arith.constant 0 : index
    %c0_31 = arith.constant 0 : index
    %c0_32 = arith.constant 0 : index
    %c7 = arith.constant 7 : index
    %17 = vector.load %arg3[%c0_29, %c0_30, %c0_31, %c0_32, %c7] : memref<1x1x1x3x26xbf16, #tpu.memory_space<vmem>>, vector<1x1x1x3x16xbf16>
    %18 = vector.shape_cast %17 : vector<1x1x1x3x16xbf16> to vector<3x16xbf16>
    %c0_33 = arith.constant 0 : index
    %c0_34 = arith.constant 0 : index
    %c0_35 = arith.constant 0 : index
    %c0_36 = arith.constant 0 : index
    %c8 = arith.constant 8 : index
    %19 = vector.load %arg3[%c0_33, %c0_34, %c0_35, %c0_36, %c8] : memref<1x1x1x3x26xbf16, #tpu.memory_space<vmem>>, vector<1x1x1x3x16xbf16>
    %20 = vector.shape_cast %19 : vector<1x1x1x3x16xbf16> to vector<3x16xbf16>
    %c0_37 = arith.constant 0 : index
    %c0_38 = arith.constant 0 : index
    %c0_39 = arith.constant 0 : index
    %c0_40 = arith.constant 0 : index
    %c9 = arith.constant 9 : index
    %21 = vector.load %arg3[%c0_37, %c0_38, %c0_39, %c0_40, %c9] : memref<1x1x1x3x26xbf16, #tpu.memory_space<vmem>>, vector<1x1x1x3x16xbf16>
    %22 = vector.shape_cast %21 : vector<1x1x1x3x16xbf16> to vector<3x16xbf16>
    %c0_41 = arith.constant 0 : index
    %c0_42 = arith.constant 0 : index
    %c0_43 = arith.constant 0 : index
    %c0_44 = arith.constant 0 : index
    %c10 = arith.constant 10 : index
    %23 = vector.load %arg3[%c0_41, %c0_42, %c0_43, %c0_44, %c10] : memref<1x1x1x3x26xbf16, #tpu.memory_space<vmem>>, vector<1x1x1x3x16xbf16>
    %24 = vector.shape_cast %23 : vector<1x1x1x3x16xbf16> to vector<3x16xbf16>
    %25 = tpu.concatenate %4, %6, %8, %10, %12, %14, %16, %18, %20, %22, %24 in 0 : vector<3x16xbf16>, vector<3x16xbf16>, vector<3x16xbf16>, vector<3x16xbf16>, vector<3x16xbf16>, vector<3x16xbf16>, vector<3x16xbf16>, vector<3x16xbf16>, vector<3x16xbf16>, vector<3x16xbf16>, vector<3x16xbf16> -> vector<33x16xbf16>
    %26 = arith.index_cast %arg2 : i32 to index
    %c0_45 = arith.constant 0 : index
    %c0_46 = arith.constant 0 : index
    %27 = vector.load %arg4[%26, %c0_45, %c0_46] : memref<11x16x33xbf16, #tpu.memory_space<vmem>>, vector<1x16x33xbf16>
    %28 = vector.shape_cast %27 : vector<1x16x33xbf16> to vector<16x33xbf16>
    %c0_47 = arith.constant 0 : index
    %c0_48 = arith.constant 0 : index
    %29 = vector.load %arg7[%c0_47, %c0_48] : memref<16x16xf32, #tpu.memory_space<vmem>>, vector<16x16xf32>
    %cst = arith.constant dense<0.000000e+00> : vector<16x16xf32>
    %30 = tpu.matmul %28, %25, %cst {dimension_numbers = #tpu.dot_dimension_numbers<[1], [0], [0], [1], [0, 0, 1, 1], [], []>} : vector<16x33xbf16>, vector<33x16xbf16>, vector<16x16xf32> -> vector<16x16xf32>
    %31 = arith.addf %29, %30 : vector<16x16xf32>
    %c0_49 = arith.constant 0 : index
    %c0_50 = arith.constant 0 : index
    %32 = vector.load %arg7[%c0_49, %c0_50] : memref<16x16xf32, #tpu.memory_space<vmem>>, vector<16x16xf32>
    tpu.vector_store %arg7[%c0_49, %c0_50], %31 {strides = array<i32>} : memref<16x16xf32, #tpu.memory_space<vmem>>, vector<16x16xf32>,
    %c10_i32 = arith.constant 10 : i32
    %33 = arith.cmpi eq, %arg2, %c10_i32 : i32
    %34 = arith.extui %33 : i1 to i32
    %c0_i32_51 = arith.constant 0 : i32
    %35 = arith.cmpi ne, %34, %c0_i32_51 : i32
    scf.if %35 {
      %c0_52 = arith.constant 0 : index
      %c0_53 = arith.constant 0 : index
      %36 = vector.load %arg7[%c0_52, %c0_53] : memref<16x16xf32, #tpu.memory_space<vmem>>, vector<16x16xf32>
      %c0_54 = arith.constant 0 : index
      %c0_55 = arith.constant 0 : index
      %37 = vector.load %arg5[%c0_54, %c0_55] : memref<16x1xf32, #tpu.memory_space<vmem>>, vector<16x1xf32>
      %38 = vector.broadcast %37 : vector<16x1xf32> to vector<16x16xf32>
      %39 = arith.addf %36, %38 : vector<16x16xf32>
      %c0_56 = arith.constant 0 : index
      %c0_57 = arith.constant 0 : index
      %c0_58 = arith.constant 0 : index
      %c0_59 = arith.constant 0 : index
      %40 = vector.load %arg6[%c0_56, %c0_57, %c0_58, %c0_59] : memref<1x1x16x16xf32, #tpu.memory_space<vmem>>, vector<1x1x16x16xf32>
      %41 = vector.shape_cast %40 : vector<1x1x16x16xf32> to vector<16x16xf32>
      %42 = vector.shape_cast %39 : vector<16x16xf32> to vector<1x1x16x16xf32>
      tpu.vector_store %arg6[%c0_56, %c0_57, %c0_58, %c0_59], %42 {strides = array<i32>} : memref<1x1x16x16xf32, #tpu.memory_space<vmem>>, vector<1x1x16x16xf32>,
    } else {
    }
    return
  }
  func.func @transform_0(%arg0: i32, %arg1: i32, %arg2: i32) -> (i32, i32, i32, i32, i32) {
    %c1_i32 = arith.constant 1 : i32
    %0 = arith.muli %arg1, %c1_i32 : i32
    %1 = arith.addi %0, %arg2 : i32
    %c0_i32 = arith.constant 0 : i32
    %c0_i32_0 = arith.constant 0 : i32
    %c0_i32_1 = arith.constant 0 : i32
    %c0_i32_2 = arith.constant 0 : i32
    return %arg0, %1, %c0_i32, %c0_i32_0, %c0_i32_1 : i32, i32, i32, i32, i32
  }
  func.func @transform_1(%arg0: i32, %arg1: i32, %arg2: i32) -> (i32, i32, i32) {
    %c0_i32 = arith.constant 0 : i32
    %c0_i32_0 = arith.constant 0 : i32
    %c0_i32_1 = arith.constant 0 : i32
    %c0_i32_2 = arith.constant 0 : i32
    return %c0_i32, %c0_i32_0, %c0_i32_1 : i32, i32, i32
  }
  func.func @transform_2(%arg0: i32, %arg1: i32, %arg2: i32) -> (i32, i32) {
    %c0_i32 = arith.constant 0 : i32
    %c0_i32_0 = arith.constant 0 : i32
    %c0_i32_1 = arith.constant 0 : i32
    return %c0_i32, %c0_i32_0 : i32, i32
  }
  func.func @transform_3(%arg0: i32, %arg1: i32, %arg2: i32) -> (i32, i32, i32, i32) {
    %c0_i32 = arith.constant 0 : i32
    %c0_i32_0 = arith.constant 0 : i32
    %c0_i32_1 = arith.constant 0 : i32
    return %arg0, %arg1, %c0_i32, %c0_i32_0 : i32, i32, i32, i32
  }
}

</mosaic_0001>

<llo_original>
// kernel: conv_layer_forward.1
$region0: #{conv_layer_forward.1}
  #allocation0 [shape = 'u32[]', space=smem, size = 0x4, offset = 0x4, fixed_abs, tag = 'smem constant byte address 0x4 - core index']
  #allocation1 [shape = 'u32[144,128]{1,0:T(1,128)}', space=vmem, size = 0x12000, scoped, tag = 'internal scratch']
  #allocation2 [shape = 'f32[16,16]{1,0:T(8,128)}', space=vmem, size = 0x2000, scoped, tag = 'scratch operand']
  %s0 = inlined_call_operand.vmem [shape: bf16[2,26,1,3,26], index: 0, kind: input, shape index: {}]
  %s1 = inlined_call_operand.vmem [shape: bf16[11,16,33], index: 1, kind: input, shape index: {}]
  %s2 = inlined_call_operand.vmem [shape: f32[16,1], index: 2, kind: input, shape index: {}]
  %s3 = inlined_call_operand.vmem [shape: f32[2,16,16,16], index: 3, kind: output, shape index: {}]
  %s4 = sld [smem:[#allocation0]]
  $region53: #{conv_layer_forward.1} parent=0
    _
  %s6 = ssub.s32 1, %s4
  %s7 = scalar_select 0, %s6, %s4
  loop: start=0, step=1, limit=354
  $region2: #{conv_layer_forward.1} parent=0 // loop_pre_header
    _
  $region3: #{conv_layer_forward.1} parent=0 // loop_header
    %s9 = sphi 0, %s13
    %p10 = scmp.ge.s32.totalorder %s9, 354
    %s16 = sphi 0, %s35
    %s17 = sphi 0, %s31
    %s18 = sphi 0, %s27
    %s19 = sphi 0, %s16
    %s20 = sphi 0, %s17
    %s21 = sphi 0, %s18
    %s22 = sphi 0, %s19
    %s23 = sphi 0, %s20
    %s24 = sphi 0, %s21
    %s42 = sphi 0, %s44
    %s45 = sphi 0, %s42
    %s46 = sphi 0, %s45
    %s62 = sphi 0, %s46
    %s66 = sphi 0, %s66
    %s68 = sphi 0, %s66
    %s69 = sphi 0, %s68
    %s83 = sphi 0, %s69
    %s87 = sphi 0, %s87
    %s89 = sphi 0, %s87
    %s90 = sphi 0, %s89
    %s104 = sphi 0, %s90
    %s112 = sphi 0, %s114
    %s115 = sphi 0, %s112
    %s116 = sphi 0, %s115
    %s132 = sphi 0, %s116
  $region4: #{conv_layer_forward.1} parent=0 // loop_header_branch
    %12 = sbr.rel (%p10) target = $region8
  $region5: #{conv_layer_forward.1} parent=0 // loop_body
    %s14 = ssub.s32 %s9, 1
    %s15 = ssub.s32 %s9, 2
    %s25 = sadd.s32 1, %s18
    %p26 = scmp.ge.s32.totalorder %s25, 11
    %s27 = scalar_select %p26, 0, %s25
    %s28 = sadd.s32 1, %s17
    %s29 = scalar_select %p26, %s28, %s17
    %p30 = scmp.ge.s32.totalorder %s29, 16
    %s31 = scalar_select %p30, 0, %s29
    %s32 = sadd.s32 1, %s16
    %s33 = scalar_select %p30, %s32, %s16
    %p34 = scmp.ge.s32.totalorder %s33, 2
    %s35 = scalar_select %p34, 0, %s33
    %s36 = sadd.s32 %s17, %s18
    %s37 = sadd.s32 %s31, %s27
    %s38 = ssub.s32 %s16, %s35
    %s39 = ssub.s32 %s36, %s37
    %s40 = sor.u32 %s38, %s39
    %p41 = scmp.eq.s32.totalorder %s40, 0
    %s43 = sadd.s32 %s42, 1
    %s44 = scalar_select %p41, %s42, %s43
    %p47 = pneg %p41
    %p48 = scmp.eq.s32.totalorder %s9, 351
    %p49 = por %p47, %p48
    %p50 = scmp.ne.s32.totalorder %s42, %s45
    %p51 = scmp.eq.s32.totalorder %s9, 0
    %p52 = por %p50, %p51
    %p53 = scmp.ne.s32.totalorder %s42, %s45
    %p54 = scmp.eq.s32.totalorder %s14, 351
    %p55 = por %p53, %p54
    %p56 = scmp.ne.s32.totalorder %s45, %s46
    %p57 = scmp.eq.s32.totalorder %s14, 0
    %p58 = por %p56, %p57
    %p59 = scmp.ne.s32.totalorder %s45, %s46
    %p60 = scmp.eq.s32.totalorder %s15, 351
    %p61 = por %p59, %p60
    %p63 = scmp.ne.s32.totalorder %s46, %s62
    %p64 = scmp.eq.s32.totalorder %s15, 0
    %p65 = por %p63, %p64
    %s67 = sadd.s32 %s66, 1
    %p70 = scmp.eq.s32.totalorder %s9, 351
    %p71 = scmp.ne.s32.totalorder %s66, %s68
    %p72 = scmp.eq.s32.totalorder %s9, 0
    %p73 = por %p71, %p72
    %p74 = scmp.ne.s32.totalorder %s66, %s68
    %p75 = scmp.eq.s32.totalorder %s14, 351
    %p76 = por %p74, %p75
    %p77 = scmp.ne.s32.totalorder %s68, %s69
    %p78 = scmp.eq.s32.totalorder %s14, 0
    %p79 = por %p77, %p78
    %p80 = scmp.ne.s32.totalorder %s68, %s69
    %p81 = scmp.eq.s32.totalorder %s15, 351
    %p82 = por %p80, %p81
    %p84 = scmp.ne.s32.totalorder %s69, %s83
    %p85 = scmp.eq.s32.totalorder %s15, 0
    %p86 = por %p84, %p85
    %s88 = sadd.s32 %s87, 1
    %p91 = scmp.eq.s32.totalorder %s9, 351
    %p92 = scmp.ne.s32.totalorder %s87, %s89
    %p93 = scmp.eq.s32.totalorder %s9, 0
    %p94 = por %p92, %p93
    %p95 = scmp.ne.s32.totalorder %s87, %s89
    %p96 = scmp.eq.s32.totalorder %s14, 351
    %p97 = por %p95, %p96
    %p98 = scmp.ne.s32.totalorder %s89, %s90
    %p99 = scmp.eq.s32.totalorder %s14, 0
    %p100 = por %p98, %p99
    %p101 = scmp.ne.s32.totalorder %s89, %s90
    %p102 = scmp.eq.s32.totalorder %s15, 351
    %p103 = por %p101, %p102
    %p105 = scmp.ne.s32.totalorder %s90, %s104
    %p106 = scmp.eq.s32.totalorder %s15, 0
    %p107 = por %p105, %p106
    %s108 = ssub.s32 %s16, %s35
    %s109 = ssub.s32 %s17, %s31
    %s110 = sor.u32 %s108, %s109
    %p111 = scmp.eq.s32.totalorder %s110, 0
    %s113 = sadd.s32 %s112, 1
    %s114 = scalar_select %p111, %s112, %s113
    %p117 = pneg %p111
    %p118 = scmp.eq.s32.totalorder %s9, 351
    %p119 = por %p117, %p118
    %p120 = scmp.ne.s32.totalorder %s112, %s115
    %p121 = scmp.eq.s32.totalorder %s9, 0
    %p122 = por %p120, %p121
    %p123 = scmp.ne.s32.totalorder %s112, %s115
    %p124 = scmp.eq.s32.totalorder %s14, 351
    %p125 = por %p123, %p124
    %p126 = scmp.ne.s32.totalorder %s115, %s116
    %p127 = scmp.eq.s32.totalorder %s14, 0
    %p128 = por %p126, %p127
    %p129 = scmp.ne.s32.totalorder %s115, %s116
    %p130 = scmp.eq.s32.totalorder %s15, 351
    %p131 = por %p129, %p130
    %p133 = scmp.ne.s32.totalorder %s116, %s132
    %p134 = scmp.eq.s32.totalorder %s15, 0
    %p135 = por %p133, %p134
    %p136 = scmp.le.s32.totalorder 1, %s9
    %p137 = scmp.lt.s32.totalorder %s9, 353
    %p138 = pnand %p136, %p137
    %p139 = pneg %p138
    // Predicated region
    $region9: #{conv_layer_forward.1} parent=5 // pred_check
      _
    $region10: #{conv_layer_forward.1} parent=5 // pred_check_branch
      %141 = sbr.rel (%p138) target = $region12
    $region11: #{conv_layer_forward.1} parent=5 // pred_region
      %s142 = ssub.s32 %s9, 1
      // Predicated region
      $region13: #{conv_layer_forward.1} parent=11 // pred_check
        %p143 = pneg %p79
      $region14: #{conv_layer_forward.1} parent=11 // pred_check_branch
        %145 = sbr.rel (%p143) target = $region16
      $region15: #{conv_layer_forward.1} parent=11 // pred_region
        _
      $region16: #{conv_layer_forward.1} parent=11 // pred_fallthru
        _
      // Predicated region
      $region17: #{conv_layer_forward.1} parent=11 // pred_check
        %p146 = pneg %p100
      $region18: #{conv_layer_forward.1} parent=11 // pred_check_branch
        %148 = sbr.rel (%p146) target = $region20
      $region19: #{conv_layer_forward.1} parent=11 // pred_region
        _
      $region20: #{conv_layer_forward.1} parent=11 // pred_fallthru
        _
    $region12: #{conv_layer_forward.1} parent=5 // pred_fallthru
      _
    %p149 = scmp.lt.s32.totalorder %s9, 352
    // Predicated region
    $region21: #{conv_layer_forward.1} parent=5 // pred_check
      %p150 = pneg %p149
    $region22: #{conv_layer_forward.1} parent=5 // pred_check_branch
      %152 = sbr.rel (%p150) target = $region24
    $region23: #{conv_layer_forward.1} parent=5 // pred_region
      // Predicated region
      $region25: #{conv_layer_forward.1} parent=23 // pred_check
        %p153 = pneg %p52
      $region26: #{conv_layer_forward.1} parent=23 // pred_check_branch
        %155 = sbr.rel (%p153) target = $region28
      $region27: #{conv_layer_forward.1} parent=23 // pred_region
        %s156 = sadd.s32 %s17, %s18
        %p157 = scmp.lt.s32.totalorder %s16, 1
        %s158 = scalar_select %p157, %s16, 1
        %p159 = scmp.lt.s32.totalorder %s156, 25
        %s160 = scalar_select %p159, %s156, 25
        %s161 = smul.addr %s158, 26
        %s162 = sadd.s32 %s160, %s161
        %s163 = smul.addr %s162, 2
        %s164 = scalar_lea.vmem %s0, %s163
        %s165 = sadd.s32 %s17, %s18
      $region28: #{conv_layer_forward.1} parent=23 // pred_fallthru
        _
    $region24: #{conv_layer_forward.1} parent=5 // pred_fallthru
      _
    %p166 = scmp.le.s32.totalorder 1, %s9
    %p167 = scmp.lt.s32.totalorder %s9, 353
    %p168 = pnand %p166, %p167
    %p169 = pneg %p168
    // Predicated region
    $region29: #{conv_layer_forward.1} parent=5 // pred_check
      _
    $region30: #{conv_layer_forward.1} parent=5 // pred_check_branch
      %171 = sbr.rel (%p168) target = $region32
    $region31: #{conv_layer_forward.1} parent=5 // pred_region
      %s172 = ssub.s32 %s9, 1
      %s173 = sadd.s32 %s20, %s21
      %p174 = scmp.lt.s32.totalorder %s19, 1
      %s175 = scalar_select %p174, %s19, 1
      %p176 = scmp.lt.s32.totalorder %s173, 25
      %s177 = scalar_select %p176, %s173, 25
      %s178 = smul.addr %s175, 26
      %s179 = sadd.s32 %s177, %s178
      %s180 = smul.addr %s179, 2
      %s181 = scalar_lea.vmem %s0, %s180
      %p182 = pneg %p58
      %p183 = pneg %p55
      %p184 = pneg %p79
      %p185 = pneg %p76
      %p186 = pneg %p100
      %p187 = pneg %p97
      %p188 = pneg %p128
      %p189 = pneg %p125
      %p190 = scmp.lt.s32.totalorder %s19, 1
      %s191 = scalar_select %p190, %s19, 1
      %p192 = scmp.lt.s32.totalorder %s20, 15
      %s193 = scalar_select %p192, %s20, 15
      %s194 = smul.addr %s193, 2
      %s195 = smul.addr %s191, 32
      %s196 = sadd.s32 %s194, %s195
      %s197 = smul.addr %s196, 8
      %s198 = scalar_lea.vmem %s3, %s197
      %s199 = sadd.s32 %s20, %s21
      %p200 = scmp.lt.s32.totalorder %s19, 1
      %s201 = scalar_select %p200, %s19, 1
      %p202 = scmp.lt.s32.totalorder %s199, 25
      %s203 = scalar_select %p202, %s199, 25
      %s204 = smul.addr %s201, 26
      %s205 = sadd.s32 %s203, %s204
      %s206 = smul.addr %s205, 2
      %s207 = scalar_lea.vmem %s0, %s206
      %s208 = sadd.s32 %s20, %s21
      %p209 = scmp.lt.s32.totalorder %s19, 1
      %s210 = scalar_select %p209, %s19, 1
      %p211 = scmp.lt.s32.totalorder %s20, 15
      %s212 = scalar_select %p211, %s20, 15
      %s213 = smul.addr %s212, 2
      %s214 = smul.addr %s210, 32
      %s215 = sadd.s32 %s213, %s214
      %s216 = smul.addr %s215, 8
      %s217 = scalar_lea.vmem %s3, %s216
      %p219 = scmp.eq.s32.totalorder %s21, 0
      // Predicated region
      $region33: #{conv_layer_forward.1} parent=31 // pred_check
        %p220 = pneg %p219
      $region34: #{conv_layer_forward.1} parent=31 // pred_check_branch
        %222 = sbr.rel (%p220) target = $region36
      $region35: #{conv_layer_forward.1} parent=31 // pred_region
        %vm223 = vcmask 130048
        %224 = vst.msk [vmem:[#allocation2] sm:$0xff] %vm223, 0.0
        %225 = vst.msk [vmem:[#allocation2 + $0x8] sm:$0xff] %vm223, 0.0
      $region36: #{conv_layer_forward.1} parent=31 // pred_fallthru
        _
      %v226 = vld [vmem:[%s207] sm:$0x3]
      %v229 = vunpack.c.l.s4 1983009808
      %v230 = vunpack.c.0.s8 %v229
      %v231 = vlaneseq
      %v232 = vshrl.u32 %v231, 7
      %v233 = vsub.s32 %v230, %v232
      %v234 = vrot.slane %v226, %v233
      %v236 = vshrl.u32 %v234, 16
      %v238 = vrot.slane %v236, 6
      %v239 = vshll.u32 %v234, 16
      %v241 = vrot.slane %v239, 7
      %v242 = vor.u32 %v238, %v241
      %243 = vrot.lane.b32.xlu0 %v242, 127
      %v244 = vpop.permute.xlu0 %243
      %v246 = vrot.slane %v234, 5
      %247 = vrot.lane.b32.xlu0 %v246, 126
      %v248 = vpop.permute.xlu0 %247
      %v249 = vrot.slane %v236, 3
      %v250 = vrot.slane %v239, 4
      %v251 = vor.u32 %v249, %v250
      %252 = vrot.lane.b32.xlu0 %v251, 125
      %v253 = vpop.permute.xlu0 %252
      %v255 = vcombine.low %v226, %v226
      %v257 = vunpack.c.l.s4 1983009808
      %v258 = vunpack.c.0.s8 %v257
      %v259 = vlaneseq
      %v260 = vshrl.u32 %v259, 7
      %v261 = vsub.s32 %v258, %v260
      %v262 = vrot.slane %v255, %v261
      %v263 = vcombine.low %v262, %v262
      %264 = vrot.lane.b32.xlu0 %v263, 124
      %v265 = vpop.permute.xlu0 %264
      %v266 = vrot.slane %v239, 1
      %v267 = vor.u32 %v236, %v266
      %268 = vrot.lane.b32.xlu0 %v266, 123
      %v269 = vpop.permute.xlu0 %268
      %270 = vrot.lane.b32.xlu0 %v267, 123
      %v271 = vpop.permute.xlu0 %270
      %v273 = vrot.slane %v234, 7
      %274 = vrot.lane.b32.xlu0 %v273, 122
      %v275 = vpop.permute.xlu0 %274
      %v276 = vrot.slane %v236, 5
      %v277 = vrot.slane %v239, 6
      %v278 = vor.u32 %v276, %v277
      %279 = vrot.lane.b32.xlu0 %v278, 121
      %v280 = vpop.permute.xlu0 %279
      %v282 = vcombine.low %v234, %v234
      %283 = vrot.lane.b32.xlu0 %v282, 120
      %v284 = vpop.permute.xlu0 %283
      %v285 = vrot.slane %v236, 2
      %v286 = vrot.slane %v239, 3
      %v287 = vor.u32 %v285, %v286
      %288 = vrot.lane.b32.xlu0 %v287, 119
      %v289 = vpop.permute.xlu0 %288
      %v291 = vrot.slane %v234, 1
      %292 = vrot.lane.b32.xlu0 %v291, 118
      %v293 = vpop.permute.xlu0 %292
      %vm294 = vcmask 1041408
      %vm295 = vsmask.f32 1280
      %vm296 = vmand %vm294, %vm295
      %v297 = vsel %vm296, %v226, %v244
      %vm298 = vcmask 1042432
      %v301 = vsel %vm298, %v297, %v248
      %vm303 = vcmask 1044480
      %vm304 = vsmask.f32 4352
      %vm305 = vmand %vm303, %vm304
      %v306 = vsel %vm305, %v301, %v253
      %vm307 = vcmask 1045504
      %v310 = vsel %vm307, %v306, %v265
      %vm312 = vcmask 1047552
      %vm313 = vsmask.f32 7424
      %vm314 = vmand %vm312, %vm313
      %v315 = vsel %vm314, %v310, %v269
      %vm316 = vcmask 1040384
      %v319 = vsel %vm316, %v271, %v275
      %vm321 = vcmask 1042432
      %vm322 = vsmask.f32 2304
      %vm323 = vmand %vm321, %vm322
      %v324 = vsel %vm323, %v319, %v280
      %vm325 = vcmask 1043456
      %v328 = vsel %vm325, %v324, %v284
      %vm330 = vcmask 1045504
      %vm331 = vsmask.f32 5376
      %vm332 = vmand %vm330, %vm331
      %v333 = vsel %vm332, %v328, %v289
      %vm334 = vcmask 1046528
      %v337 = vsel %vm334, %v333, %v293
      %s339 = smul.u32 %s21, 2
      %s340 = smul.addr %s339, 4
      %s341 = scalar_lea.vmem %s1, %s340
      %v342 = vld [vmem:[%s341] sm:$0xf]
      %v343 = vld [vmem:[%s341 + $0x4] sm:$0xf]
      %v344 = vld [vmem:[#allocation2] sm:$0xff]
      %v345 = vld [vmem:[#allocation2 + $0x8] sm:$0xff]
      %v348 = vunpack.c.l.b16 %v342
      %v349 = vunpack.c.l.b16 %v343
      %v350 = vpack.c.b16 %v349, %v348
      %vm351 = vcmask 269312
      %v353 = vsel %vm351, %v350, 0
      %v355 = vsel 0, 4294967295, 65535
      %v356 = vsel %vm316, %v355, 0
      %v357 = vand.u32 %v293, %v356
      %359 = vmatprep.subr.bf16.mxu0 0
      %360 = vmatpush1.bf16.msra.mxu0 %v315
      %361 = vmatprep.subr.bf16.mxu0 0
      %362 = vmatpush1.bf16.msra.mxu0 %v337
      %363 = vmatprep.subr.bf16.mxu0 0
      %364 = vmatpush1.bf16.msra.mxu0 %v357
      %365 = vmatprep.subr.bf16.mxu0 0
      %366 = vmatpush1.bf16.msra.mxu0 0
      %367 = vmatprep.subr.bf16.mxu0 0
      %368 = vmatpush1.bf16.msra.mxu0 0
      %369 = vmatprep.subr.bf16.mxu0 0
      %370 = vmatpush1.bf16.msra.mxu0 0
      %371 = vmatprep.subr.bf16.mxu0 0
      %372 = vmatpush1.bf16.msra.mxu0 0
      %373 = vmatprep.subr.bf16.mxu0 0
      %374 = vmatpush1.bf16.msra.mxu0 0
      %375 = vmatprep.subr.bf16.mxu0 0
      %376 = vmatpush1.bf16.msra.mxu0 0
      %377 = vmatprep.subr.bf16.mxu0 0
      %378 = vmatpush1.bf16.msra.mxu0 0
      %379 = vmatprep.subr.bf16.mxu0 0
      %380 = vmatpush1.bf16.msra.mxu0 0
      %381 = vmatprep.subr.bf16.mxu0 0
      %382 = vmatpush1.bf16.msra.mxu0 0
      %383 = vmatprep.subr.bf16.mxu0 0
      %384 = vmatpush1.bf16.msra.mxu0 0
      %385 = vmatprep.subr.bf16.mxu0 0
      %386 = vmatpush1.bf16.msra.mxu0 0
      %387 = vmatprep.subr.bf16.mxu0 0
      %388 = vmatpush1.bf16.msra.mxu0 0
      %389 = vmatprep.subr.bf16.mxu0 0
      %390 = vmatpush1.bf16.msra.mxu0 0
      %391 = vmatprep.mubr.bf16.mxu0 0
      %392 = vmatmul.mubr.bf16.gmra.mrb[0].mxu0 %v353
      %v393 = vpop.f32.mrb[0].mxu0
      %v394 = vadd.f32 0.0, %v393
      %v395 = vpop.f32.mrb[0].mxu0
      %v396 = vpop.f32.mrb[0].mxu0
      %v397 = vadd.f32 0.0, %v396
      %v398 = vpop.f32.mrb[0].mxu0
      %399 = vdwg.mxu0
      %v400 = vadd.f32 %v344, %v394
      %v401 = vadd.f32 %v345, %v397
      %vm402 = vcmask 130048
      %403 = vst.msk [vmem:[#allocation2] sm:$0xff] %vm402, %v400
      %404 = vst.msk [vmem:[#allocation2 + $0x8] sm:$0xff] %vm402, %v401
      %p405 = scmp.eq.s32.totalorder %s21, 10
      // Predicated region
      $region37: #{conv_layer_forward.1} parent=31 // pred_check
        %p406 = pneg %p405
      $region38: #{conv_layer_forward.1} parent=31 // pred_check_branch
        %408 = sbr.rel (%p406) target = $region40
      $region39: #{conv_layer_forward.1} parent=31 // pred_region
        %v409 = vld [vmem:[#allocation2] sm:$0xff]
        %v410 = vld [vmem:[#allocation2 + $0x8] sm:$0xff]
        %v411 = vld [vmem:[%s2] sm:$0xff]
        %v412 = vld [vmem:[%s2 + $0x8] sm:$0xff]
        %414 = vset.pattern.permute.xlu0 0
        %415 = vperm.xlu0 %414, %v411
        %v416 = vpop.permute.xlu0 %415
        %419 = vset.pattern.permute.xlu0 0
        %420 = vperm.xlu0 %419, %v412
        %v421 = vpop.permute.xlu0 %420
        %v423 = vadd.f32 %v409, %v416
        %v424 = vadd.f32 %v410, %v421
        %425 = vst.msk [vmem:[%s217] sm:$0xff] %vm402, %v423
        %426 = vst.msk [vmem:[%s217 + $0x8] sm:$0xff] %vm402, %v424
      $region40: #{conv_layer_forward.1} parent=31 // pred_fallthru
        _
      %p427 = scmp.lt.s32.totalorder %s19, 1
      %s428 = scalar_select %p427, %s19, 1
      %p429 = scmp.lt.s32.totalorder %s20, 15
      %s430 = scalar_select %p429, %s20, 15
      %s431 = smul.addr %s430, 2
      %s432 = smul.addr %s428, 32
      %s433 = sadd.s32 %s431, %s432
      %s434 = smul.addr %s433, 8
      %s435 = scalar_lea.vmem %s3, %s434
      // Predicated region
      $region41: #{conv_layer_forward.1} parent=31 // pred_check
        %p436 = pneg %p125
      $region42: #{conv_layer_forward.1} parent=31 // pred_check_branch
        %438 = sbr.rel (%p436) target = $region44
      $region43: #{conv_layer_forward.1} parent=31 // pred_region
        _
      $region44: #{conv_layer_forward.1} parent=31 // pred_fallthru
        _
    $region32: #{conv_layer_forward.1} parent=5 // pred_fallthru
      _
    %p439 = scmp.le.s32.totalorder 2, %s9
    // Predicated region
    $region45: #{conv_layer_forward.1} parent=5 // pred_check
      %p440 = pneg %p439
    $region46: #{conv_layer_forward.1} parent=5 // pred_check_branch
      %442 = sbr.rel (%p440) target = $region48
    $region47: #{conv_layer_forward.1} parent=5 // pred_region
      %s443 = ssub.s32 %s9, 2
      // Predicated region
      $region49: #{conv_layer_forward.1} parent=47 // pred_check
        %p444 = pneg %p131
      $region50: #{conv_layer_forward.1} parent=47 // pred_check_branch
        %446 = sbr.rel (%p444) target = $region52
      $region51: #{conv_layer_forward.1} parent=47 // pred_region
        %p447 = scmp.lt.s32.totalorder %s22, 1
        %s448 = scalar_select %p447, %s22, 1
        %p449 = scmp.lt.s32.totalorder %s23, 15
        %s450 = scalar_select %p449, %s23, 15
        %s451 = smul.addr %s450, 2
        %s452 = smul.addr %s448, 32
        %s453 = sadd.s32 %s451, %s452
        %s454 = smul.addr %s453, 8
        %s455 = scalar_lea.vmem %s3, %s454
      $region52: #{conv_layer_forward.1} parent=47 // pred_fallthru
        _
    $region48: #{conv_layer_forward.1} parent=5 // pred_fallthru
      _
  $region6: #{conv_layer_forward.1} parent=0 // loop_footer
    %s13 = sadd.s32 1, %s9
  $region7: #{conv_layer_forward.1} parent=0 // loop_footer_branch
    %8 = sbr.rel target = $region3
  $region8: #{conv_layer_forward.1} parent=0 // loop_exit
    _

</llo_original>
